<compile_context>
chip_gen: v5e
topology: v5e:2x2
jax: 0.10.0
libtpu: 0.0.40
codegen_flags: <defaults>
</compile_context>

<pallas_src>
import functools

import jax
import jax.numpy as jnp
from jax.experimental import pallas as pl
from jax.experimental.pallas import tpu as pltpu

LEAKY_SLOPE = 0.2
BN_EPS = 1e-5


def _round_up(x, m):
    return ((x + m - 1) // m) * m


def _leaky_relu(v):
    return jnp.where(v > 0, v, LEAKY_SLOPE * v)


def _linear_block_kernel(x_ref, w1_ref, b1_ref, w2_ref, b2_ref, o_ref):
    """Fused residual block (eval semantics).

    BN(eval) + bias are pre-folded into weights/bias, so each stage is
    leaky_relu(x @ W' + b'). Dropout is identity in eval mode.
    bf16 MXU matmuls with f32 accumulation; f32 epilogue.
    """
    x = x_ref[...]                                           # (TM, Lp) f32
    # Stage 1
    y = jnp.dot(x.astype(jnp.bfloat16), w1_ref[...],
                preferred_element_type=jnp.float32)
    y = _leaky_relu(y + b1_ref[...])
    # Dropout (eval) -> identity
    # Stage 2
    y = jnp.dot(y.astype(jnp.bfloat16), w2_ref[...],
                preferred_element_type=jnp.float32)
    y = _leaky_relu(y + b2_ref[...])
    # Dropout (eval) -> identity
    o_ref[...] = (x + y).astype(o_ref.dtype)


def fuse_params(raw, l_pad):
    """Fold BatchNorm1d (eval, running stats) + Linear bias into the weights,
    zero-pad the feature dim to l_pad (multiple of 128), cast weights to bf16.

        s = gamma / sqrt(var + eps),  t = beta - mean * s
        W' = W * s (per-output-column),  b' = b * s + t
    """
    def fold(w, b, gamma, beta, mean, var):
        l = w.shape[0]
        s = gamma / jnp.sqrt(var + BN_EPS)
        t = beta - mean * s
        w_f = w * s[None, :]
        b_f = b * s + t
        w_p = jnp.zeros((l_pad, l_pad), jnp.float32).at[:l, :l].set(w_f)
        b_p = jnp.zeros((1, l_pad), jnp.float32).at[0, :l].set(b_f)
        return w_p.astype(jnp.bfloat16), b_p

    w1, b1 = fold(raw["w1"], raw["b1"], raw["gamma1"], raw["beta1"],
                  raw["mean1"], raw["var1"])
    w2, b2 = fold(raw["w2"], raw["b2"], raw["gamma2"], raw["beta2"],
                  raw["mean2"], raw["var2"])
    return {"w1": w1, "b1": b1, "w2": w2, "b2": b2}


@functools.partial(jax.jit, static_argnames=("tm",))
def linear_block_forward(x, fused, *, tm=256):
    """x: (N, L) f32. fused: output of fuse_params (padded/folded weights)."""
    n, l = x.shape
    lp = fused["w1"].shape[-1]
    assert lp % 128 == 0 and lp >= l

    # Batch tile: as large as requested, multiple of 8, no larger than N_pad.
    tm = max(8, min(_round_up(tm, 8), _round_up(n, 8)))
    n_pad = _round_up(n, tm)

    x_p = x
    if (n_pad, lp) != (n, l):
        x_p = jnp.zeros((n_pad, lp), x.dtype).at[:n, :l].set(x)

    x_spec = pl.BlockSpec((tm, lp), lambda i: (i, 0))
    w_spec = pl.BlockSpec((lp, lp), lambda i: (0, 0))   # weights VMEM-resident
    v_spec = pl.BlockSpec((1, lp), lambda i: (0, 0))    # bias rows resident

    elt = jnp.dtype(x.dtype).itemsize
    vmem_bytes = (2 * 2 * tm * lp * elt        # double-buffered x + out tiles
                  + 2 * 2 * lp * lp * 2        # two bf16 weights (x2 buffers)
                  + 2 * 2 * lp * 4)            # two bias rows
    vmem_limit = min(int(vmem_bytes * 2) + (8 << 20), 100 << 20)

    flops = 2 * 2 * n_pad * lp * lp            # two matmuls
    bytes_accessed = 2 * n_pad * lp * elt + 2 * lp * lp * 2 + 2 * lp * 4

    out = pl.pallas_call(
        _linear_block_kernel,
        out_shape=jax.ShapeDtypeStruct((n_pad, lp), x.dtype),
        grid_spec=pltpu.PrefetchScalarGridSpec(
            num_scalar_prefetch=0,
            grid=(n_pad // tm,),
            in_specs=[x_spec, w_spec, v_spec, w_spec, v_spec],
            out_specs=x_spec,
        ),
        compiler_params=pltpu.CompilerParams(
            dimension_semantics=("parallel",),
            vmem_limit_bytes=vmem_limit,
        ),
        cost_estimate=pl.CostEstimate(
            flops=flops, transcendentals=0, bytes_accessed=bytes_accessed),
    )(x_p, fused["w1"], fused["b1"], fused["w2"], fused["b2"])

    return out[:n, :l]


def init_params(key, l_size):
    """Deterministic init matching the module's parameter shapes.

    nn.Linear(L, L): weight (L, L), bias (L,), uniform(-1/sqrt(L), 1/sqrt(L)).
    (We sample W^T of shape (in, out) directly: i.i.d. uniform, so equivalent.)
    nn.BatchNorm1d(L): gamma/beta/running stats; non-trivial values are used
    here so the BN fold is actually exercised against the reference.
    """
    ks = jax.random.split(key, 12)
    bound = 1.0 / (float(l_size) ** 0.5)
    u = lambda k, shape, lo, hi: jax.random.uniform(k, shape, jnp.float32, lo, hi)

    w1 = u(ks[0], (l_size, l_size), -bound, bound)
    b1 = u(ks[1], (l_size,), -bound, bound)
    w2 = u(ks[2], (l_size, l_size), -bound, bound)
    b2 = u(ks[3], (l_size,), -bound, bound)

    return {
        "w1": w1, "b1": b1,
        "gamma1": u(ks[4], (l_size,), 0.8, 1.2),
        "beta1": u(ks[5], (l_size,), -0.1, 0.1),
        "mean1": u(ks[6], (l_size,), -0.2, 0.2),
        "var1": u(ks[7], (l_size,), 0.5, 1.5),
        "w2": w2, "b2": b2,
        "gamma2": u(ks[8], (l_size,), 0.8, 1.2),
        "beta2": u(ks[9], (l_size,), -0.1, 0.1),
        "mean2": u(ks[10], (l_size,), -0.2, 0.2),
        "var2": u(ks[11], (l_size,), 0.5, 1.5),
    }


def reference_forward(x, raw):
    """Pure-JAX (f32) reference of the PyTorch module in eval mode."""
    def stage(v, w, b, gamma, beta, mean, var):
        y = v @ w + b
        y = (y - mean) / jnp.sqrt(var + BN_EPS) * gamma + beta
        return jnp.where(y > 0, y, LEAKY_SLOPE * y)

    y = stage(x, raw["w1"], raw["b1"], raw["gamma1"], raw["beta1"],
              raw["mean1"], raw["var1"])
    y = stage(y, raw["w2"], raw["b2"], raw["gamma2"], raw["beta2"],
              raw["mean2"], raw["var2"])
    return x + y


if __name__ == "__main__":
    batch, l_size = 24, 48
    key = jax.random.PRNGKey(0)
    kx, kp = jax.random.split(key)

    x = jax.random.normal(kx, (batch, l_size), jnp.float32)
    raw = init_params(kp, l_size)
    fused = fuse_params(raw, _round_up(l_size, 128))

    # tm=8 -> 3 grid steps on this tiny demo, exercising the batch pipeline;
    # production callers keep the default tm=256.
    out = linear_block_forward(x, fused, tm=8)
    out = jax.block_until_ready(out)

    ref = reference_forward(x, raw)
    assert out.shape == (batch, l_size)
    max_err = float(jnp.max(jnp.abs(out - ref)))
    assert jnp.allclose(out, ref, atol=5e-2, rtol=5e-2), (
        f"mismatch vs reference, max abs err {max_err}")

    # TODO(synk): training-mode BatchNorm (batch statistics) and stochastic
    # Dropout are not implemented; eval-mode semantics are used.
    print("KERNEL_OK")
</pallas_src>

<mosaic_0001>
module attributes {stable_mosaic.version = 11 : i64} {
  func.func @_linear_block_kernel(%arg0: i32, %arg1: memref<8x128xf32, #tpu.memory_space<vmem>>, %arg2: memref<128x128xbf16, #tpu.memory_space<vmem>>, %arg3: memref<1x128xf32, #tpu.memory_space<vmem>>, %arg4: memref<128x128xbf16, #tpu.memory_space<vmem>>, %arg5: memref<1x128xf32, #tpu.memory_space<vmem>>, %arg6: memref<8x128xf32, #tpu.memory_space<vmem>>) attributes {dimension_semantics = [#tpu.dimension_semantics<parallel>], iteration_bounds = array<i64: 3>, scalar_prefetch = 0 : i64, scratch_operands = 0 : i64, tpu.core_type = #tpu.core_type<tc>, window_params = [{transform_indices = @transform_0, window_bounds = array<i64: 8, 128>}, {pipeline_mode = #tpu.pipeline_mode<synchronous>, transform_indices = @transform_1, window_bounds = array<i64: 128, 128>}, {pipeline_mode = #tpu.pipeline_mode<synchronous>, transform_indices = @transform_2, window_bounds = array<i64: 1, 128>}, {pipeline_mode = #tpu.pipeline_mode<synchronous>, transform_indices = @transform_3, window_bounds = array<i64: 128, 128>}, {pipeline_mode = #tpu.pipeline_mode<synchronous>, transform_indices = @transform_4, window_bounds = array<i64: 1, 128>}, {transform_indices = @transform_5, window_bounds = array<i64: 8, 128>}]} {
    %c0 = arith.constant 0 : index
    %c0_0 = arith.constant 0 : index
    %0 = vector.load %arg1[%c0, %c0_0] : memref<8x128xf32, #tpu.memory_space<vmem>>, vector<8x128xf32>
    %1 = arith.truncf %0 : vector<8x128xf32> to vector<8x128xbf16>
    %c0_1 = arith.constant 0 : index
    %c0_2 = arith.constant 0 : index
    %2 = vector.load %arg2[%c0_1, %c0_2] : memref<128x128xbf16, #tpu.memory_space<vmem>>, vector<128x128xbf16>
    %cst = arith.constant dense<0.000000e+00> : vector<8x128xf32>
    %3 = tpu.matmul %1, %2, %cst {dimension_numbers = #tpu.dot_dimension_numbers<[1], [0], [0], [1], [0, 0, 1, 1], [], []>} : vector<8x128xbf16>, vector<128x128xbf16>, vector<8x128xf32> -> vector<8x128xf32>
    %c0_3 = arith.constant 0 : index
    %c0_4 = arith.constant 0 : index
    %4 = vector.load %arg3[%c0_3, %c0_4] : memref<1x128xf32, #tpu.memory_space<vmem>>, vector<1x128xf32>
    %5 = vector.broadcast %4 : vector<1x128xf32> to vector<8x128xf32>
    %6 = arith.addf %3, %5 : vector<8x128xf32>
    %cst_5 = arith.constant 0.000000e+00 : f32
    %7 = vector.broadcast %cst_5 : f32 to vector<8x128xf32>
    %8 = arith.cmpf ogt, %6, %7 : vector<8x128xf32>
    %cst_6 = arith.constant 2.000000e-01 : f32
    %9 = vector.broadcast %cst_6 : f32 to vector<8x128xf32>
    %10 = arith.mulf %9, %6 : vector<8x128xf32>
    %11 = arith.select %8, %6, %10 : vector<8x128xi1>, vector<8x128xf32>
    %12 = arith.truncf %11 : vector<8x128xf32> to vector<8x128xbf16>
    %c0_7 = arith.constant 0 : index
    %c0_8 = arith.constant 0 : index
    %13 = vector.load %arg4[%c0_7, %c0_8] : memref<128x128xbf16, #tpu.memory_space<vmem>>, vector<128x128xbf16>
    %cst_9 = arith.constant dense<0.000000e+00> : vector<8x128xf32>
    %14 = tpu.matmul %12, %13, %cst_9 {dimension_numbers = #tpu.dot_dimension_numbers<[1], [0], [0], [1], [0, 0, 1, 1], [], []>} : vector<8x128xbf16>, vector<128x128xbf16>, vector<8x128xf32> -> vector<8x128xf32>
    %c0_10 = arith.constant 0 : index
    %c0_11 = arith.constant 0 : index
    %15 = vector.load %arg5[%c0_10, %c0_11] : memref<1x128xf32, #tpu.memory_space<vmem>>, vector<1x128xf32>
    %16 = vector.broadcast %15 : vector<1x128xf32> to vector<8x128xf32>
    %17 = arith.addf %14, %16 : vector<8x128xf32>
    %cst_12 = arith.constant 0.000000e+00 : f32
    %18 = vector.broadcast %cst_12 : f32 to vector<8x128xf32>
    %19 = arith.cmpf ogt, %17, %18 : vector<8x128xf32>
    %cst_13 = arith.constant 2.000000e-01 : f32
    %20 = vector.broadcast %cst_13 : f32 to vector<8x128xf32>
    %21 = arith.mulf %20, %17 : vector<8x128xf32>
    %22 = arith.select %19, %17, %21 : vector<8x128xi1>, vector<8x128xf32>
    %23 = arith.addf %0, %22 : vector<8x128xf32>
    %c0_14 = arith.constant 0 : index
    %c0_15 = arith.constant 0 : index
    %24 = vector.load %arg6[%c0_14, %c0_15] : memref<8x128xf32, #tpu.memory_space<vmem>>, vector<8x128xf32>
    tpu.vector_store %arg6[%c0_14, %c0_15], %23 {strides = array<i32>} : memref<8x128xf32, #tpu.memory_space<vmem>>, vector<8x128xf32>,
    return
  }
  func.func @transform_0(%arg0: i32) -> (i32, i32) {
    %c0_i32 = arith.constant 0 : i32
    %c0_i32_0 = arith.constant 0 : i32
    return %arg0, %c0_i32 : i32, i32
  }
  func.func @transform_1(%arg0: i32) -> (i32, i32) {
    %c0_i32 = arith.constant 0 : i32
    %c0_i32_0 = arith.constant 0 : i32
    %c0_i32_1 = arith.constant 0 : i32
    return %c0_i32, %c0_i32_0 : i32, i32
  }
  func.func @transform_2(%arg0: i32) -> (i32, i32) {
    %c0_i32 = arith.constant 0 : i32
    %c0_i32_0 = arith.constant 0 : i32
    %c0_i32_1 = arith.constant 0 : i32
    return %c0_i32, %c0_i32_0 : i32, i32
  }
  func.func @transform_3(%arg0: i32) -> (i32, i32) {
    %c0_i32 = arith.constant 0 : i32
    %c0_i32_0 = arith.constant 0 : i32
    %c0_i32_1 = arith.constant 0 : i32
    return %c0_i32, %c0_i32_0 : i32, i32
  }
  func.func @transform_4(%arg0: i32) -> (i32, i32) {
    %c0_i32 = arith.constant 0 : i32
    %c0_i32_0 = arith.constant 0 : i32
    %c0_i32_1 = arith.constant 0 : i32
    return %c0_i32, %c0_i32_0 : i32, i32
  }
  func.func @transform_5(%arg0: i32) -> (i32, i32) {
    %c0_i32 = arith.constant 0 : i32
    %c0_i32_0 = arith.constant 0 : i32
    return %arg0, %c0_i32 : i32, i32
  }
}

</mosaic_0001>

<llo_original>
// kernel: linear_block_forward.1
$region0: #{linear_block_forward.1}
  #allocation0 [shape = 'u32[]', space=smem, size = 0x4, offset = 0x4, fixed_abs, tag = 'smem constant byte address 0x4 - core index']
  #allocation1 [shape = 'u32[72,128]{1,0:T(1,128)}', space=vmem, size = 0x9000, scoped, tag = 'internal scratch']
  %s0 = inlined_call_operand.vmem [shape: f32[24,128], index: 0, kind: input, shape index: {}]
  %s1 = inlined_call_operand.vmem [shape: bf16[128,128], index: 1, kind: input, shape index: {}]
  %s2 = inlined_call_operand.vmem [shape: f32[1,128], index: 2, kind: input, shape index: {}]
  %s3 = inlined_call_operand.hbm [shape: bf16[128,128], index: 3, kind: input, shape index: {}]
  %s4 = inlined_call_operand.vmem [shape: f32[1,128], index: 4, kind: input, shape index: {}]
  %s5 = inlined_call_operand.hbm [shape: f32[24,128], index: 5, kind: output, shape index: {}]
  %s6 = sld [smem:[#allocation0]]
  $region57: #{linear_block_forward.1} parent=0
    _
  %s8 = ssub.s32 1, %s6
  %s9 = scalar_select 0, %s8, %s6
  $region1: #{linear_block_forward.1} parent=0
    #allocation2 [shape = 'u8[32768]{0}', space=vmem, size = 0x8000, scoped, tag = 'input window, operand 3, single buffered']
    #allocation3 [shape = 's32[2]{0}', space=sflag, size = 0x8, scoped, tag = 'scoped memory for linear_block_forward.1']
    #allocation4 [shape = 's32[2]{0}', space=sflag, size = 0x8, scoped, tag = 'scoped memory for linear_block_forward.1']
    #allocation5 [shape = 'u8[8192]{0}', space=vmem, size = 0x2000, scoped, tag = 'output window, operand 0']
    %10 = vsyncpa [#allocation3], 0
    %11 = vsyncpa [#allocation4], 0
    %s12 = scalar_lea.sflag [#allocation4], 1
    %13 = vsyncpa %s12, 0
    loop: start=0, step=1, limit=5
    $region2: #{linear_block_forward.1} parent=1 // loop_pre_header
      _
    $region3: #{linear_block_forward.1} parent=1 // loop_header
      %s15 = sphi 0, %s19
      %p16 = scmp.ge.s32.totalorder %s15, 5
      %s25 = sphi 0, %s27
      %s28 = sphi 0, %s25
      %s29 = sphi 0, %s28
      %s45 = sphi 0, %s29
      %s49 = sphi 0, %s49
      %s51 = sphi 0, %s49
      %s52 = sphi 0, %s51
      %s66 = sphi 0, %s52
      %s70 = sphi 0, %s70
      %s72 = sphi 0, %s70
      %s73 = sphi 0, %s72
      %s87 = sphi 0, %s73
      %s91 = sphi 0, %s91
      %s93 = sphi 0, %s91
      %s94 = sphi 0, %s93
      %s108 = sphi 0, %s94
      %s112 = sphi 0, %s112
      %s114 = sphi 0, %s112
      %s115 = sphi 0, %s114
      %s129 = sphi 0, %s115
      %s135 = sphi 0, %s137
      %s138 = sphi 0, %s135
      %s139 = sphi 0, %s138
      %s155 = sphi 0, %s139
    $region4: #{linear_block_forward.1} parent=1 // loop_header_branch
      %18 = sbr.rel (%p16) target = $region8
    $region5: #{linear_block_forward.1} parent=1 // loop_body
      %s20 = ssub.s32 %s15, 1
      %s21 = ssub.s32 %s15, 2
      %s22 = sadd.s32 %s15, 1
      %s23 = ssub.s32 %s15, %s22
      %p24 = scmp.eq.s32.totalorder %s23, 0
      %s26 = sadd.s32 %s25, 1
      %s27 = scalar_select %p24, %s25, %s26
      %p30 = pneg %p24
      %p31 = scmp.eq.s32.totalorder %s15, 2
      %p32 = por %p30, %p31
      %p33 = scmp.ne.s32.totalorder %s25, %s28
      %p34 = scmp.eq.s32.totalorder %s15, 0
      %p35 = por %p33, %p34
      %p36 = scmp.ne.s32.totalorder %s25, %s28
      %p37 = scmp.eq.s32.totalorder %s20, 2
      %p38 = por %p36, %p37
      %p39 = scmp.ne.s32.totalorder %s28, %s29
      %p40 = scmp.eq.s32.totalorder %s20, 0
      %p41 = por %p39, %p40
      %p42 = scmp.ne.s32.totalorder %s28, %s29
      %p43 = scmp.eq.s32.totalorder %s21, 2
      %p44 = por %p42, %p43
      %p46 = scmp.ne.s32.totalorder %s29, %s45
      %p47 = scmp.eq.s32.totalorder %s21, 0
      %p48 = por %p46, %p47
      %s50 = sadd.s32 %s49, 1
      %p53 = scmp.eq.s32.totalorder %s15, 2
      %p54 = scmp.ne.s32.totalorder %s49, %s51
      %p55 = scmp.eq.s32.totalorder %s15, 0
      %p56 = por %p54, %p55
      %p57 = scmp.ne.s32.totalorder %s49, %s51
      %p58 = scmp.eq.s32.totalorder %s20, 2
      %p59 = por %p57, %p58
      %p60 = scmp.ne.s32.totalorder %s51, %s52
      %p61 = scmp.eq.s32.totalorder %s20, 0
      %p62 = por %p60, %p61
      %p63 = scmp.ne.s32.totalorder %s51, %s52
      %p64 = scmp.eq.s32.totalorder %s21, 2
      %p65 = por %p63, %p64
      %p67 = scmp.ne.s32.totalorder %s52, %s66
      %p68 = scmp.eq.s32.totalorder %s21, 0
      %p69 = por %p67, %p68
      %s71 = sadd.s32 %s70, 1
      %p74 = scmp.eq.s32.totalorder %s15, 2
      %p75 = scmp.ne.s32.totalorder %s70, %s72
      %p76 = scmp.eq.s32.totalorder %s15, 0
      %p77 = por %p75, %p76
      %p78 = scmp.ne.s32.totalorder %s70, %s72
      %p79 = scmp.eq.s32.totalorder %s20, 2
      %p80 = por %p78, %p79
      %p81 = scmp.ne.s32.totalorder %s72, %s73
      %p82 = scmp.eq.s32.totalorder %s20, 0
      %p83 = por %p81, %p82
      %p84 = scmp.ne.s32.totalorder %s72, %s73
      %p85 = scmp.eq.s32.totalorder %s21, 2
      %p86 = por %p84, %p85
      %p88 = scmp.ne.s32.totalorder %s73, %s87
      %p89 = scmp.eq.s32.totalorder %s21, 0
      %p90 = por %p88, %p89
      %s92 = sadd.s32 %s91, 1
      %p95 = scmp.eq.s32.totalorder %s15, 2
      %p96 = scmp.ne.s32.totalorder %s91, %s93
      %p97 = scmp.eq.s32.totalorder %s15, 0
      %p98 = por %p96, %p97
      %p99 = scmp.ne.s32.totalorder %s91, %s93
      %p100 = scmp.eq.s32.totalorder %s20, 2
      %p101 = por %p99, %p100
      %p102 = scmp.ne.s32.totalorder %s93, %s94
      %p103 = scmp.eq.s32.totalorder %s20, 0
      %p104 = por %p102, %p103
      %p105 = scmp.ne.s32.totalorder %s93, %s94
      %p106 = scmp.eq.s32.totalorder %s21, 2
      %p107 = por %p105, %p106
      %p109 = scmp.ne.s32.totalorder %s94, %s108
      %p110 = scmp.eq.s32.totalorder %s21, 0
      %p111 = por %p109, %p110
      %s113 = sadd.s32 %s112, 1
      %p116 = scmp.eq.s32.totalorder %s15, 2
      %p117 = scmp.ne.s32.totalorder %s112, %s114
      %p118 = scmp.eq.s32.totalorder %s15, 0
      %p119 = por %p117, %p118
      %p120 = scmp.ne.s32.totalorder %s112, %s114
      %p121 = scmp.eq.s32.totalorder %s20, 2
      %p122 = por %p120, %p121
      %p123 = scmp.ne.s32.totalorder %s114, %s115
      %p124 = scmp.eq.s32.totalorder %s20, 0
      %p125 = por %p123, %p124
      %p126 = scmp.ne.s32.totalorder %s114, %s115
      %p127 = scmp.eq.s32.totalorder %s21, 2
      %p128 = por %p126, %p127
      %p130 = scmp.ne.s32.totalorder %s115, %s129
      %p131 = scmp.eq.s32.totalorder %s21, 0
      %p132 = por %p130, %p131
      %s133 = ssub.s32 %s15, %s22
      %p134 = scmp.eq.s32.totalorder %s133, 0
      %s136 = sadd.s32 %s135, 1
      %s137 = scalar_select %p134, %s135, %s136
      %p140 = pneg %p134
      %p141 = scmp.eq.s32.totalorder %s15, 2
      %p142 = por %p140, %p141
      %p143 = scmp.ne.s32.totalorder %s135, %s138
      %p144 = scmp.eq.s32.totalorder %s15, 0
      %p145 = por %p143, %p144
      %p146 = scmp.ne.s32.totalorder %s135, %s138
      %p147 = scmp.eq.s32.totalorder %s20, 2
      %p148 = por %p146, %p147
      %p149 = scmp.ne.s32.totalorder %s138, %s139
      %p150 = scmp.eq.s32.totalorder %s20, 0
      %p151 = por %p149, %p150
      %p152 = scmp.ne.s32.totalorder %s138, %s139
      %p153 = scmp.eq.s32.totalorder %s21, 2
      %p154 = por %p152, %p153
      %p156 = scmp.ne.s32.totalorder %s139, %s155
      %p157 = scmp.eq.s32.totalorder %s21, 0
      %p158 = por %p156, %p157
      %p159 = scmp.le.s32.totalorder 1, %s15
      %p160 = scmp.lt.s32.totalorder %s15, 4
      %p161 = pnand %p159, %p160
      %p162 = pneg %p161
      // Predicated region
      $region9: #{linear_block_forward.1} parent=5 // pred_check
        _
      $region10: #{linear_block_forward.1} parent=5 // pred_check_branch
        %164 = sbr.rel (%p161) target = $region12
      $region11: #{linear_block_forward.1} parent=5 // pred_region
        %s165 = ssub.s32 %s15, 1
        // Predicated region
        $region13: #{linear_block_forward.1} parent=11 // pred_check
          %p166 = pneg %p62
        $region14: #{linear_block_forward.1} parent=11 // pred_check_branch
          %168 = sbr.rel (%p166) target = $region16
        $region15: #{linear_block_forward.1} parent=11 // pred_region
          _
        $region16: #{linear_block_forward.1} parent=11 // pred_fallthru
          _
        // Predicated region
        $region17: #{linear_block_forward.1} parent=11 // pred_check
          %p169 = pneg %p83
        $region18: #{linear_block_forward.1} parent=11 // pred_check_branch
          %171 = sbr.rel (%p169) target = $region20
        $region19: #{linear_block_forward.1} parent=11 // pred_region
          _
        $region20: #{linear_block_forward.1} parent=11 // pred_fallthru
          _
        // Predicated region
        $region21: #{linear_block_forward.1} parent=11 // pred_check
          %p172 = pneg %p104
        $region22: #{linear_block_forward.1} parent=11 // pred_check_branch
          %174 = sbr.rel (%p172) target = $region24
        $region23: #{linear_block_forward.1} parent=11 // pred_region
          %176 = vsyncadd [#allocation3], 0
          %s177 = sshll.u32 %s3, 4
          %s178 = int_to_ptr.hbm [resolvable:$true] %s177
          %s179 = sshll.u32 [#allocation2], 4
          %s180 = int_to_ptr.vmem [resolvable:$true] %s179
          %185 = dma.hbm_to_vmem [thread:$0]  %s178, 1024, %s180, [#allocation3], 64, 64, 4
        $region24: #{linear_block_forward.1} parent=11 // pred_fallthru
          _
        // Predicated region
        $region25: #{linear_block_forward.1} parent=11 // pred_check
          %p186 = pneg %p125
        $region26: #{linear_block_forward.1} parent=11 // pred_check_branch
          %188 = sbr.rel (%p186) target = $region28
        $region27: #{linear_block_forward.1} parent=11 // pred_region
          _
        $region28: #{linear_block_forward.1} parent=11 // pred_fallthru
          _
      $region12: #{linear_block_forward.1} parent=5 // pred_fallthru
        _
      %p189 = scmp.lt.s32.totalorder %s15, 3
      // Predicated region
      $region29: #{linear_block_forward.1} parent=5 // pred_check
        %p190 = pneg %p189
      $region30: #{linear_block_forward.1} parent=5 // pred_check_branch
        %192 = sbr.rel (%p190) target = $region32
      $region31: #{linear_block_forward.1} parent=5 // pred_region
        // Predicated region
        $region33: #{linear_block_forward.1} parent=31 // pred_check
          %p193 = pneg %p35
        $region34: #{linear_block_forward.1} parent=31 // pred_check_branch
          %195 = sbr.rel (%p193) target = $region36
        $region35: #{linear_block_forward.1} parent=31 // pred_region
          %p196 = scmp.lt.s32.totalorder %s15, 2
          %s197 = scalar_select %p196, %s15, 2
          %s198 = smul.addr %s197, 8
          %s199 = scalar_lea.vmem %s0, %s198
        $region36: #{linear_block_forward.1} parent=31 // pred_fallthru
          _
      $region32: #{linear_block_forward.1} parent=5 // pred_fallthru
        _
      %p200 = scmp.le.s32.totalorder 1, %s15
      %p201 = scmp.lt.s32.totalorder %s15, 4
      %p202 = pnand %p200, %p201
      %p203 = pneg %p202
      // Predicated region
      $region37: #{linear_block_forward.1} parent=5 // pred_check
        _
      $region38: #{linear_block_forward.1} parent=5 // pred_check_branch
        %205 = sbr.rel (%p202) target = $region40
      $region39: #{linear_block_forward.1} parent=5 // pred_region
        %s206 = ssub.s32 %s15, 1
        // Predicated region
        $region41: #{linear_block_forward.1} parent=39 // pred_check
          %p207 = pneg %p104
        $region42: #{linear_block_forward.1} parent=39 // pred_check_branch
          %209 = sbr.rel (%p207) target = $region44
        $region43: #{linear_block_forward.1} parent=39 // pred_region
          %211 = dma.done [#allocation3], 1024
        $region44: #{linear_block_forward.1} parent=39 // pred_fallthru
          _
        %p212 = scmp.lt.s32.totalorder %s20, 2
        %s213 = scalar_select %p212, %s20, 2
        %s214 = smul.addr %s213, 8
        %s215 = scalar_lea.vmem %s0, %s214
        %p216 = pneg %p41
        %p217 = pneg %p38
        %p218 = pneg %p62
        %p219 = pneg %p59
        %p220 = pneg %p83
        %p221 = pneg %p80
        %p222 = pneg %p104
        %p223 = pneg %p101
        %p224 = pneg %p125
        %p225 = pneg %p122
        %p226 = pneg %p151
        %p227 = pneg %p148
        %s228 = sand.u32 %s138, 1
        %s229 = scalar_lea.sflag [#allocation4], %s228
        %s230 = sand.u32 %s138, 1
        %s231 = smul.addr %s230, 8
        %s232 = scalar_lea.vmem [#allocation5], %s231
        %p233 = scmp.lt.s32.totalorder %s20, 2
        %s234 = scalar_select %p233, %s20, 2
        %s235 = smul.addr %s234, 8
        %s236 = scalar_lea.vmem %s0, %s235
        %v237 = vld [vmem:[%s236] sm:$0xff]
        %v238 = vpack.c.bf16 %v237, %v237
        %v239 = vld [vmem:[%s1] sm:$0xf]
        %v240 = vld [vmem:[%s1 + $0x4] sm:$0xf]
        %v241 = vld [vmem:[%s1 + $0x8] sm:$0xf]
        %v242 = vld [vmem:[%s1 + $0xc] sm:$0xf]
        %v243 = vld [vmem:[%s1 + $0x10] sm:$0xf]
        %v244 = vld [vmem:[%s1 + $0x14] sm:$0xf]
        %v245 = vld [vmem:[%s1 + $0x18] sm:$0xf]
        %v246 = vld [vmem:[%s1 + $0x1c] sm:$0xf]
        %v247 = vld [vmem:[%s1 + $0x20] sm:$0xf]
        %v248 = vld [vmem:[%s1 + $0x24] sm:$0xf]
        %v249 = vld [vmem:[%s1 + $0x28] sm:$0xf]
        %v250 = vld [vmem:[%s1 + $0x2c] sm:$0xf]
        %v251 = vld [vmem:[%s1 + $0x30] sm:$0xf]
        %v252 = vld [vmem:[%s1 + $0x34] sm:$0xf]
        %v253 = vld [vmem:[%s1 + $0x38] sm:$0xf]
        %v254 = vld [vmem:[%s1 + $0x3c] sm:$0xf]
        %v255 = vld [vmem:[%s2] sm:$0x1]
        %v257 = vperm.slane %v255, 0
        %v275 = vunpack.c.l.b16 %v239
        %v276 = vunpack.c.l.b16 %v240
        %v277 = vunpack.c.l.b16 %v241
        %v278 = vunpack.c.l.b16 %v242
        %v279 = vunpack.c.l.b16 %v243
        %v280 = vunpack.c.l.b16 %v244
        %v281 = vunpack.c.l.b16 %v245
        %v282 = vunpack.c.l.b16 %v246
        %v283 = vunpack.c.l.b16 %v247
        %v284 = vunpack.c.l.b16 %v248
        %v285 = vunpack.c.l.b16 %v249
        %v286 = vunpack.c.l.b16 %v250
        %v287 = vunpack.c.l.b16 %v251
        %v288 = vunpack.c.l.b16 %v252
        %v289 = vunpack.c.l.b16 %v253
        %v290 = vunpack.c.l.b16 %v254
        %v291 = vpack.c.b16 %v276, %v275
        %v292 = vpack.c.b16 %v278, %v277
        %v293 = vpack.c.b16 %v280, %v279
        %v294 = vpack.c.b16 %v282, %v281
        %v295 = vpack.c.b16 %v284, %v283
        %v296 = vpack.c.b16 %v286, %v285
        %v297 = vpack.c.b16 %v288, %v287
        %v298 = vpack.c.b16 %v290, %v289
        %307 = vmatpush.bf16.msra.mxu0 %v298
        %308 = vmatpush.bf16.msra.mxu0 %v297
        %309 = vmatpush.bf16.msra.mxu0 %v296
        %310 = vmatpush.bf16.msra.mxu0 %v295
        %311 = vmatpush.bf16.msra.mxu0 %v294
        %312 = vmatpush.bf16.msra.mxu0 %v293
        %313 = vmatpush.bf16.msra.mxu0 %v292
        %314 = vmatpush.bf16.msra.mxu0 %v291
        %315 = vmatmul.bf16.gmra.mxu0 %v238
        %v316 = vpop.f32.mrf.mxu0
        %v317 = vadd.f32 %v257, %v316
        %v318 = vpop.f32.mrf.mxu0
        %319 = vdwg.mxu0
        %vm320 = vcmp.gt.f32.partialorder %v317, 0.0
        %v321 = vmul.f32 %v317, 0.2
        %v322 = vsel %vm320, %v317, %v321
        %v323 = vpack.c.bf16 %v322, %v322
        %v324 = vld [vmem:[#allocation2] sm:$0xf]
        %v325 = vld [vmem:[#allocation2 + $0x4] sm:$0xf]
        %v326 = vld [vmem:[#allocation2 + $0x8] sm:$0xf]
        %v327 = vld [vmem:[#allocation2 + $0xc] sm:$0xf]
        %v328 = vld [vmem:[#allocation2 + $0x10] sm:$0xf]
        %v329 = vld [vmem:[#allocation2 + $0x14] sm:$0xf]
        %v330 = vld [vmem:[#allocation2 + $0x18] sm:$0xf]
        %v331 = vld [vmem:[#allocation2 + $0x1c] sm:$0xf]
        %v332 = vld [vmem:[#allocation2 + $0x20] sm:$0xf]
        %v333 = vld [vmem:[#allocation2 + $0x24] sm:$0xf]
        %v334 = vld [vmem:[#allocation2 + $0x28] sm:$0xf]
        %v335 = vld [vmem:[#allocation2 + $0x2c] sm:$0xf]
        %v336 = vld [vmem:[#allocation2 + $0x30] sm:$0xf]
        %v337 = vld [vmem:[#allocation2 + $0x34] sm:$0xf]
        %v338 = vld [vmem:[#allocation2 + $0x38] sm:$0xf]
        %v339 = vld [vmem:[#allocation2 + $0x3c] sm:$0xf]
        %v340 = vld [vmem:[%s4] sm:$0x1]
        %v342 = vperm.slane %v340, 0
        %v360 = vunpack.c.l.b16 %v324
        %v361 = vunpack.c.l.b16 %v325
        %v362 = vunpack.c.l.b16 %v326
        %v363 = vunpack.c.l.b16 %v327
        %v364 = vunpack.c.l.b16 %v328
        %v365 = vunpack.c.l.b16 %v329
        %v366 = vunpack.c.l.b16 %v330
        %v367 = vunpack.c.l.b16 %v331
        %v368 = vunpack.c.l.b16 %v332
        %v369 = vunpack.c.l.b16 %v333
        %v370 = vunpack.c.l.b16 %v334
        %v371 = vunpack.c.l.b16 %v335
        %v372 = vunpack.c.l.b16 %v336
        %v373 = vunpack.c.l.b16 %v337
        %v374 = vunpack.c.l.b16 %v338
        %v375 = vunpack.c.l.b16 %v339
        %v376 = vpack.c.b16 %v361, %v360
        %v377 = vpack.c.b16 %v363, %v362
        %v378 = vpack.c.b16 %v365, %v364
        %v379 = vpack.c.b16 %v367, %v366
        %v380 = vpack.c.b16 %v369, %v368
        %v381 = vpack.c.b16 %v371, %v370
        %v382 = vpack.c.b16 %v373, %v372
        %v383 = vpack.c.b16 %v375, %v374
        %392 = vmatpush.bf16.msra.mxu0 %v383
        %393 = vmatpush.bf16.msra.mxu0 %v382
        %394 = vmatpush.bf16.msra.mxu0 %v381
        %395 = vmatpush.bf16.msra.mxu0 %v380
        %396 = vmatpush.bf16.msra.mxu0 %v379
        %397 = vmatpush.bf16.msra.mxu0 %v378
        %398 = vmatpush.bf16.msra.mxu0 %v377
        %399 = vmatpush.bf16.msra.mxu0 %v376
        %400 = vmatmul.bf16.gmra.mxu0 %v323
        %v401 = vpop.f32.mrf.mxu0
        %v402 = vadd.f32 %v342, %v401
        %v403 = vpop.f32.mrf.mxu0
        %404 = vdwg.mxu0
        %vm405 = vcmp.gt.f32.partialorder %v402, 0.0
        %v406 = vmul.f32 %v402, 0.2
        %v407 = vsel %vm405, %v402, %v406
        %v408 = vadd.f32 %v237, %v407
        %409 = vst [vmem:[%s232] sm:$0xff] %v408
        %s410 = sand.u32 %s138, 1
        %s411 = scalar_lea.sflag [#allocation4], %s410
        %s412 = sand.u32 %s138, 1
        %s413 = smul.addr %s412, 8
        %s414 = scalar_lea.vmem [#allocation5], %s413
        // Predicated region
        $region45: #{linear_block_forward.1} parent=39 // pred_check
          %p415 = pneg %p148
        $region46: #{linear_block_forward.1} parent=39 // pred_check_branch
          %417 = sbr.rel (%p415) target = $region48
        $region47: #{linear_block_forward.1} parent=39 // pred_region
          %419 = vsyncadd %s411, 0
          %s420 = smul.addr %s20, 8
          %s421 = scalar_lea.hbm %s5, %s420
          %s423 = sshll.u32 %s414, 4
          %s424 = int_to_ptr.vmem [resolvable:$true] %s423
          %s425 = sshll.u32 %s421, 4
          %s426 = int_to_ptr.hbm [resolvable:$true] %s425
          %428 = dma.vmem_to_hbm [thread:$0]  %s424, 128, %s426, %s411
        $region48: #{linear_block_forward.1} parent=39 // pred_fallthru
          _
      $region40: #{linear_block_forward.1} parent=5 // pred_fallthru
        _
      %p429 = scmp.le.s32.totalorder 2, %s15
      // Predicated region
      $region49: #{linear_block_forward.1} parent=5 // pred_check
        %p430 = pneg %p429
      $region50: #{linear_block_forward.1} parent=5 // pred_check_branch
        %432 = sbr.rel (%p430) target = $region52
      $region51: #{linear_block_forward.1} parent=5 // pred_region
        %s433 = ssub.s32 %s15, 2
        // Predicated region
        $region53: #{linear_block_forward.1} parent=51 // pred_check
          %p434 = pneg %p154
        $region54: #{linear_block_forward.1} parent=51 // pred_check_branch
          %436 = sbr.rel (%p434) target = $region56
        $region55: #{linear_block_forward.1} parent=51 // pred_region
          %s437 = sand.u32 %s139, 1
          %s438 = scalar_lea.sflag [#allocation4], %s437
          %s439 = sand.u32 %s139, 1
          %s440 = smul.addr %s439, 8
          %s441 = scalar_lea.vmem [#allocation5], %s440
          %443 = dma.done %s438, 128
        $region56: #{linear_block_forward.1} parent=51 // pred_fallthru
          _
      $region52: #{linear_block_forward.1} parent=5 // pred_fallthru
        _
    $region6: #{linear_block_forward.1} parent=1 // loop_footer
      %s19 = sadd.s32 1, %s15
    $region7: #{linear_block_forward.1} parent=1 // loop_footer_branch
      %14 = sbr.rel target = $region3
    $region8: #{linear_block_forward.1} parent=1 // loop_exit
      _
    %444 = vsyncpa [#allocation3], 1
    %s445 = scalar_lea.sflag [#allocation3], 1
    %446 = vsyncpa %s445, 1
    %447 = vsyncpa [#allocation4], 1
    %s448 = scalar_lea.sflag [#allocation4], 1
    %449 = vsyncpa %s448, 1

</llo_original>
